<compile_context>
chip_gen: v5e
topology: v5e:2x2
jax: 0.10.0
libtpu: 0.0.40
codegen_flags: <defaults>
</compile_context>

<pallas_src>
import functools

import jax
import jax.numpy as jnp
from jax.experimental import pallas as pl
from jax.experimental.pallas import tpu as pltpu


def _quantize_kernel(logits_ref, emb_ref, z_ref, q_ref, idx_ref, *, M, K, D):
    """Single-step kernel: the whole problem is resident in VMEM.

    logits_ref : (B, M, K) f32  logits in native layout (module axis middle)
    emb_ref    : (M, K, D) f32  codebooks
    z_ref      : (B, M, K) f32  hard one-hot codes                  (output)
    q_ref      : (B, M*D) f32   quantized vectors, lane-dense slab  (output)
    idx_ref    : (B, M)    i32  argmax indices                      (output)
    """
    logits = logits_ref[...]                                         # (B, M, K)

    # argmax over the codebook dimension.  Ties resolve to the first maximal
    # index (torch.argmax behaviour).  A NaN row selects the first NaN index
    # (also torch.argmax behaviour, since max propagates NaN).
    lane_ids = jax.lax.broadcasted_iota(jnp.int32, logits.shape, 2)  # (B, M, K)
    max_val = jnp.max(logits, axis=-1, keepdims=True)                # (B, M, 1)
    is_max = jnp.isnan(logits) | (logits == max_val)
    masked_ids = jnp.where(is_max, lane_ids, K)                      # (B, M, K)
    argmax = jnp.min(masked_ids, axis=-1, keepdims=True)             # (B, M, 1)

    # one_hot_argmax
    z = (lane_ids == argmax).astype(logits.dtype)                    # (B, M, K)
    z_ref[...] = z
    idx_ref[...] = jnp.min(masked_ids, axis=-1).astype(jnp.int32)    # (B, M)

    # z.transpose(0,1).bmm(embeddings).transpose(0,1) in the PyTorch code,
    # i.e. per-module one-hot @ codebook.  M is small & static -> unrolled
    # Python loop; the result is written once as a lane-dense (B, M*D) slab.
    q_parts = []
    for m in range(M):
        q_parts.append(
            jnp.dot(z[:, m, :], emb_ref[m],
                    preferred_element_type=jnp.float32))             # (B, D)
    q_ref[...] = jnp.concatenate(q_parts, axis=-1).astype(q_ref.dtype)


@functools.partial(jax.jit, static_argnames=("M", "K", "D"))
def concrete_quantizer_forward(logits, embeddings, *, M, K, D):
    """Eval-mode forward of ConcreteQuantizer.

    logits     : (B, M*K) float32
    embeddings : (M, K, D) float32
    """
    B = logits.shape[0]
    assert logits.shape[-1] == M * K
    assert embeddings.shape == (M, K, D)

    # (B, M*K) -> (B, M, K): row-major split of the minor dim (free, no data
    # movement) -- no transposes anywhere in the wrapper.
    logits_bmk = logits.reshape(B, M, K)

    z, quantized, encoding_indices = pl.pallas_call(
        functools.partial(_quantize_kernel, M=M, K=K, D=D),
        out_shape=(
            jax.ShapeDtypeStruct((B, M, K), jnp.float32),   # z
            jax.ShapeDtypeStruct((B, M * D), jnp.float32),  # quantized (lane-dense)
            jax.ShapeDtypeStruct((B, M), jnp.int32),        # encoding indices
        ),
        # Single invocation (no grid): whole arrays resident in VMEM.
        in_specs=[
            pl.BlockSpec(memory_space=pltpu.MemorySpace.VMEM),
            pl.BlockSpec(memory_space=pltpu.MemorySpace.VMEM),
        ],
        out_specs=(
            pl.BlockSpec(memory_space=pltpu.MemorySpace.VMEM),
            pl.BlockSpec(memory_space=pltpu.MemorySpace.VMEM),
            pl.BlockSpec(memory_space=pltpu.MemorySpace.VMEM),
        ),
    )(logits_bmk, embeddings)

    quantized_stack = quantized.reshape(B, M, D)   # free row-major reshape
    loss = jnp.float32(0.0)                        # eval path: kl = 0.0

    return {
        "quantized": quantized,
        "quantized_stack": quantized_stack,
        "encoding_indices": encoding_indices,
        "z": z,
        "loss": loss,
    }


def _reference_forward(logits, embeddings, M, K, D):
    """Pure-JAX reference mirroring the PyTorch eval path."""
    B = logits.shape[0]
    l = logits.reshape(B, M, K)
    idx = jnp.argmax(l, axis=-1)                               # (B, M)
    z = jax.nn.one_hot(idx, K, dtype=jnp.float32)              # (B, M, K)
    # z.transpose(0,1).bmm(embeddings).transpose(0,1)
    q_stack = jnp.einsum("bmk,mkd->bmd", z, embeddings)        # (B, M, D)
    return q_stack, q_stack.reshape(B, M * D), idx.astype(jnp.int32), z


if __name__ == "__main__":
    # Small shapes consistent with the module: bsz=8, M=2, K=16, D=32.
    B, M, K, D = 8, 2, 16, 32

    key = jax.random.PRNGKey(0)
    k_logits, k_emb = jax.random.split(key)

    # Deterministic synthetic parameters (nn.Parameter(torch.randn(M, K, D))).
    embeddings = jax.random.normal(k_emb, (M, K, D), dtype=jnp.float32)
    # Case 2 input: bsz x (M * K)
    logits = jax.random.normal(k_logits, (B, M * K), dtype=jnp.float32)

    out = concrete_quantizer_forward(logits, embeddings, M=M, K=K, D=D)
    jax.block_until_ready(out)

    # Correctness check against the pure-JAX reference.
    ref_stack, ref_quant, ref_idx, ref_z = _reference_forward(
        logits, embeddings, M, K, D)
    assert out["quantized"].shape == (B, M * D)
    assert out["quantized_stack"].shape == (B, M, D)
    assert out["encoding_indices"].shape == (B, M)
    assert out["z"].shape == (B, M, K)
    assert jnp.allclose(out["quantized_stack"], ref_stack, atol=1e-5)
    assert jnp.allclose(out["quantized"], ref_quant, atol=1e-5)
    assert jnp.array_equal(out["encoding_indices"], ref_idx)
    assert jnp.allclose(out["z"], ref_z)
    assert float(out["loss"]) == 0.0

    print("KERNEL_OK")
</pallas_src>

<mosaic_0001>
module attributes {stable_mosaic.version = 11 : i64} {
  func.func @_quantize_kernel(%arg0: memref<8x2x16xf32, #tpu.memory_space<vmem>>, %arg1: memref<2x16x32xf32, #tpu.memory_space<vmem>>, %arg2: memref<8x2x16xf32, #tpu.memory_space<vmem>>, %arg3: memref<8x64xf32, #tpu.memory_space<vmem>>, %arg4: memref<8x2xi32, #tpu.memory_space<vmem>>) attributes {dimension_semantics = [], scalar_prefetch = 0 : i64, scratch_operands = 0 : i64, tpu.core_type = #tpu.core_type<tc>} {
    %c0 = arith.constant 0 : index
    %c0_0 = arith.constant 0 : index
    %c0_1 = arith.constant 0 : index
    %0 = vector.load %arg0[%c0, %c0_0, %c0_1] : memref<8x2x16xf32, #tpu.memory_space<vmem>>, vector<8x2x16xf32>
    %1 = tpu.iota {dimensions = array<i32: 2>} : vector<8x2x16xi32>
    %cst = arith.constant dense<0xFF800000> : vector<8x2xf32>
    %2 = vector.multi_reduction <maximumf>, %0, %cst [2] : vector<8x2x16xf32> to vector<8x2xf32>
    %3 = vector.shape_cast %2 : vector<8x2xf32> to vector<8x2x1xf32>
    %4 = arith.cmpf one, %0, %0 : vector<8x2x16xf32>
    %5 = vector.broadcast %3 : vector<8x2x1xf32> to vector<8x2x16xf32>
    %6 = arith.cmpf oeq, %0, %5 : vector<8x2x16xf32>
    %7 = arith.ori %4, %6 : vector<8x2x16xi1>
    %c16_i32 = arith.constant 16 : i32
    %8 = vector.broadcast %c16_i32 : i32 to vector<8x2x16xi32>
    %9 = arith.select %7, %1, %8 : vector<8x2x16xi1>, vector<8x2x16xi32>
    %cst_2 = arith.constant dense<2147483647> : vector<8x2xi32>
    %10 = vector.multi_reduction <minsi>, %9, %cst_2 [2] : vector<8x2x16xi32> to vector<8x2xi32>
    %11 = vector.shape_cast %10 : vector<8x2xi32> to vector<8x2x1xi32>
    %12 = vector.broadcast %11 : vector<8x2x1xi32> to vector<8x2x16xi32>
    %13 = arith.cmpi eq, %1, %12 : vector<8x2x16xi32>
    %14 = arith.extui %13 : vector<8x2x16xi1> to vector<8x2x16xi32>
    %15 = arith.sitofp %14 : vector<8x2x16xi32> to vector<8x2x16xf32>
    %c0_3 = arith.constant 0 : index
    %c0_4 = arith.constant 0 : index
    %c0_5 = arith.constant 0 : index
    %16 = vector.load %arg2[%c0_3, %c0_4, %c0_5] : memref<8x2x16xf32, #tpu.memory_space<vmem>>, vector<8x2x16xf32>
    tpu.vector_store %arg2[%c0_3, %c0_4, %c0_5], %15 {strides = array<i32>} : memref<8x2x16xf32, #tpu.memory_space<vmem>>, vector<8x2x16xf32>,
    %cst_6 = arith.constant dense<2147483647> : vector<8x2xi32>
    %17 = vector.multi_reduction <minsi>, %9, %cst_6 [2] : vector<8x2x16xi32> to vector<8x2xi32>
    %c0_7 = arith.constant 0 : index
    %c0_8 = arith.constant 0 : index
    %18 = vector.load %arg4[%c0_7, %c0_8] : memref<8x2xi32, #tpu.memory_space<vmem>>, vector<8x2xi32>
    tpu.vector_store %arg4[%c0_7, %c0_8], %17 {strides = array<i32>} : memref<8x2xi32, #tpu.memory_space<vmem>>, vector<8x2xi32>,
    %19 = vector.extract_strided_slice %15 {offsets = [0, 0, 0], sizes = [8, 1, 16], strides = [1, 1, 1]} : vector<8x2x16xf32> to vector<8x1x16xf32>
    %20 = vector.shape_cast %19 : vector<8x1x16xf32> to vector<8x16xf32>
    %c0_9 = arith.constant 0 : index
    %c0_10 = arith.constant 0 : index
    %c0_11 = arith.constant 0 : index
    %21 = vector.load %arg1[%c0_9, %c0_10, %c0_11] : memref<2x16x32xf32, #tpu.memory_space<vmem>>, vector<1x16x32xf32>
    %22 = vector.shape_cast %21 : vector<1x16x32xf32> to vector<16x32xf32>
    %cst_12 = arith.constant dense<0.000000e+00> : vector<8x32xf32>
    %23 = tpu.matmul %20, %22, %cst_12 {dimension_numbers = #tpu.dot_dimension_numbers<[1], [0], [0], [1], [0, 0, 1, 1], [], []>} : vector<8x16xf32>, vector<16x32xf32>, vector<8x32xf32> -> vector<8x32xf32>
    %24 = vector.extract_strided_slice %15 {offsets = [0, 1, 0], sizes = [8, 1, 16], strides = [1, 1, 1]} : vector<8x2x16xf32> to vector<8x1x16xf32>
    %25 = vector.shape_cast %24 : vector<8x1x16xf32> to vector<8x16xf32>
    %c1 = arith.constant 1 : index
    %c0_13 = arith.constant 0 : index
    %c0_14 = arith.constant 0 : index
    %26 = vector.load %arg1[%c1, %c0_13, %c0_14] : memref<2x16x32xf32, #tpu.memory_space<vmem>>, vector<1x16x32xf32>
    %27 = vector.shape_cast %26 : vector<1x16x32xf32> to vector<16x32xf32>
    %cst_15 = arith.constant dense<0.000000e+00> : vector<8x32xf32>
    %28 = tpu.matmul %25, %27, %cst_15 {dimension_numbers = #tpu.dot_dimension_numbers<[1], [0], [0], [1], [0, 0, 1, 1], [], []>} : vector<8x16xf32>, vector<16x32xf32>, vector<8x32xf32> -> vector<8x32xf32>
    %29 = tpu.concatenate %23, %28 in 1 : vector<8x32xf32>, vector<8x32xf32> -> vector<8x64xf32>
    %c0_16 = arith.constant 0 : index
    %c0_17 = arith.constant 0 : index
    %30 = vector.load %arg3[%c0_16, %c0_17] : memref<8x64xf32, #tpu.memory_space<vmem>>, vector<8x64xf32>
    tpu.vector_store %arg3[%c0_16, %c0_17], %29 {strides = array<i32>} : memref<8x64xf32, #tpu.memory_space<vmem>>, vector<8x64xf32>,
    return
  }
}

</mosaic_0001>

<llo_original>
// kernel: concrete_quantizer_forward.1
$region0: #{concrete_quantizer_forward.1}
  #allocation0 [shape = 'u32[]', space=smem, size = 0x4, offset = 0x4, fixed_abs, tag = 'smem constant byte address 0x4 - core index']
  #allocation1 [shape = 'u32[72,128]{1,0:T(1,128)}', space=vmem, size = 0x9000, scoped, tag = 'internal scratch']
  %s0 = inlined_call_operand.vmem [shape: f32[8,2,16], index: 0, kind: input, shape index: {}]
  %s1 = inlined_call_operand.hbm [shape: f32[2,16,32], index: 1, kind: input, shape index: {}]
  %s2 = inlined_call_operand.hbm [shape: f32[8,2,16], index: 2, kind: output, shape index: {0}]
  %s3 = inlined_call_operand.vmem [shape: f32[8,64], index: 3, kind: output, shape index: {1}]
  %s4 = inlined_call_operand.vmem [shape: s32[8,2], index: 4, kind: output, shape index: {2}]
  %5 = xla_tuple %s2, %s3, %s4
  %s6 = sld [smem:[#allocation0]]
  $region38: #{concrete_quantizer_forward.1} parent=0
    _
  %s8 = ssub.s32 1, %s6
  %s9 = scalar_select 0, %s8, %s6
  $region1: #{concrete_quantizer_forward.1} parent=0
    #allocation2 [shape = 'u8[16384]{0}', space=vmem, size = 0x4000, scoped, tag = 'input window, operand 1, single buffered']
    #allocation3 [shape = 's32[1]{0}', space=sflag, size = 0x4, scoped, tag = 'scoped memory for concrete_quantizer_forward.1']
    #allocation4 [shape = 's32[1]{0}', space=sflag, size = 0x4, scoped, tag = 'scoped memory for concrete_quantizer_forward.1']
    #allocation5 [shape = 'u8[8192]{0}', space=vmem, size = 0x2000, scoped, tag = 'output window, operand 0, single buffered']
    %10 = vsyncpa [#allocation3], 0
    %11 = vsyncpa [#allocation4], 0
    // Predicated region
    $region2: #{concrete_quantizer_forward.1} parent=1 // pred_check
      _
    $region3: #{concrete_quantizer_forward.1} parent=1 // pred_check_branch
      %13 = sbr.rel (0) target = $region5
    $region4: #{concrete_quantizer_forward.1} parent=1 // pred_region
      _
    $region5: #{concrete_quantizer_forward.1} parent=1 // pred_fallthru
      _
    // Predicated region
    $region6: #{concrete_quantizer_forward.1} parent=1 // pred_check
      _
    $region7: #{concrete_quantizer_forward.1} parent=1 // pred_check_branch
      %15 = sbr.rel (0) target = $region9
    $region8: #{concrete_quantizer_forward.1} parent=1 // pred_region
      %17 = vsyncadd [#allocation3], 0
      %s18 = sshll.u32 %s1, 4
      %s19 = int_to_ptr.hbm [resolvable:$true] %s18
      %s20 = sshll.u32 [#allocation2], 4
      %s21 = int_to_ptr.vmem [resolvable:$true] %s20
      %26 = dma.hbm_to_vmem [thread:$0]  %s19, 512, %s21, [#allocation3], 128, 128, 8
    $region9: #{concrete_quantizer_forward.1} parent=1 // pred_fallthru
      _
    // Predicated region
    $region10: #{concrete_quantizer_forward.1} parent=1 // pred_check
      _
    $region11: #{concrete_quantizer_forward.1} parent=1 // pred_check_branch
      %28 = sbr.rel (0) target = $region13
    $region12: #{concrete_quantizer_forward.1} parent=1 // pred_region
      %30 = dma.done [#allocation3], 512
    $region13: #{concrete_quantizer_forward.1} parent=1 // pred_fallthru
      _
    %v31 = vld [vmem:[%s0] sm:$0x3]
    %v32 = vld [vmem:[%s0 + $0x2] sm:$0x3]
    %v33 = vld [vmem:[%s0 + $0x4] sm:$0x3]
    %v34 = vld [vmem:[%s0 + $0x6] sm:$0x3]
    %v35 = vld [vmem:[%s0 + $0x8] sm:$0x3]
    %v36 = vld [vmem:[%s0 + $0xa] sm:$0x3]
    %v37 = vld [vmem:[%s0 + $0xc] sm:$0x3]
    %v38 = vld [vmem:[%s0 + $0xe] sm:$0x3]
    %v39 = vlaneseq
    %v40 = vand.u32 %v39, 127
    %vm41 = vcmask 123904
    %v42 = vsel %vm41, %v31, -inf
    %43 = vmax.xlane.f32.xlu0 %v42
    %v44 = vpop.xlane.xlu0 %43
    %v45 = vsel %vm41, %v32, -inf
    %46 = vmax.xlane.f32.xlu0 %v45
    %v47 = vpop.xlane.xlu0 %46
    %v48 = vsel %vm41, %v33, -inf
    %49 = vmax.xlane.f32.xlu0 %v48
    %v50 = vpop.xlane.xlu0 %49
    %v51 = vsel %vm41, %v34, -inf
    %52 = vmax.xlane.f32.xlu0 %v51
    %v53 = vpop.xlane.xlu0 %52
    %v54 = vsel %vm41, %v35, -inf
    %55 = vmax.xlane.f32.xlu0 %v54
    %v56 = vpop.xlane.xlu0 %55
    %v57 = vsel %vm41, %v36, -inf
    %58 = vmax.xlane.f32.xlu0 %v57
    %v59 = vpop.xlane.xlu0 %58
    %v60 = vsel %vm41, %v37, -inf
    %61 = vmax.xlane.f32.xlu0 %v60
    %v62 = vpop.xlane.xlu0 %61
    %v63 = vsel %vm41, %v38, -inf
    %64 = vmax.xlane.f32.xlu0 %v63
    %v65 = vpop.xlane.xlu0 %64
    %vm66 = vcmp.ne.f32.partialorder %v31, %v31
    %vm67 = vcmp.ne.f32.partialorder %v32, %v32
    %vm68 = vcmp.ne.f32.partialorder %v33, %v33
    %vm69 = vcmp.ne.f32.partialorder %v34, %v34
    %vm70 = vcmp.ne.f32.partialorder %v35, %v35
    %vm71 = vcmp.ne.f32.partialorder %v36, %v36
    %vm72 = vcmp.ne.f32.partialorder %v37, %v37
    %vm73 = vcmp.ne.f32.partialorder %v38, %v38
    %vm74 = vcmp.eq.f32.partialorder %v31, %v44
    %vm75 = vcmp.eq.f32.partialorder %v32, %v47
    %vm76 = vcmp.eq.f32.partialorder %v33, %v50
    %vm77 = vcmp.eq.f32.partialorder %v34, %v53
    %vm78 = vcmp.eq.f32.partialorder %v35, %v56
    %vm79 = vcmp.eq.f32.partialorder %v36, %v59
    %vm80 = vcmp.eq.f32.partialorder %v37, %v62
    %vm81 = vcmp.eq.f32.partialorder %v38, %v65
    %vm82 = vmor %vm66, %vm74
    %vm83 = vmor %vm67, %vm75
    %vm84 = vmor %vm68, %vm76
    %vm85 = vmor %vm69, %vm77
    %vm86 = vmor %vm70, %vm78
    %vm87 = vmor %vm71, %vm79
    %vm88 = vmor %vm72, %vm80
    %vm89 = vmor %vm73, %vm81
    %v90 = vsel %vm82, %v40, 16
    %v91 = vsel %vm83, %v40, 16
    %v92 = vsel %vm84, %v40, 16
    %v93 = vsel %vm85, %v40, 16
    %v94 = vsel %vm86, %v40, 16
    %v95 = vsel %vm87, %v40, 16
    %v96 = vsel %vm88, %v40, 16
    %v97 = vsel %vm89, %v40, 16
    %v98 = vsel %vm41, %v90, 2147483647
    %v99 = vand.u32 %v98, 65535
    %v100 = vshra.s32 %v98, 16
    %v101 = vcvt.s32.f32 %v99
    %v102 = vcvt.s32.f32 %v100
    %103 = vmin.xlane.f32.xlu0 %v102
    %v104 = vpop.xlane.xlu0 %103
    %vm105 = vcmp.eq.f32.partialorder %v102, %v104
    %v106 = vsel %vm105, %v101, inf
    %107 = vmin.xlane.f32.xlu0 %v106
    %v108 = vpop.xlane.xlu0 %107
    %v109 = vcvt.f32.s32 %v108
    %v110 = vcvt.f32.s32 %v104
    %v111 = vshll.u32 %v110, 16
    %v112 = vadd.s32 %v111, %v109
    %v113 = vsel %vm41, %v91, 2147483647
    %v114 = vand.u32 %v113, 65535
    %v115 = vshra.s32 %v113, 16
    %v116 = vcvt.s32.f32 %v114
    %v117 = vcvt.s32.f32 %v115
    %118 = vmin.xlane.f32.xlu0 %v117
    %v119 = vpop.xlane.xlu0 %118
    %vm120 = vcmp.eq.f32.partialorder %v117, %v119
    %v121 = vsel %vm120, %v116, inf
    %122 = vmin.xlane.f32.xlu0 %v121
    %v123 = vpop.xlane.xlu0 %122
    %v124 = vcvt.f32.s32 %v123
    %v125 = vcvt.f32.s32 %v119
    %v126 = vshll.u32 %v125, 16
    %v127 = vadd.s32 %v126, %v124
    %v128 = vsel %vm41, %v92, 2147483647
    %v129 = vand.u32 %v128, 65535
    %v130 = vshra.s32 %v128, 16
    %v131 = vcvt.s32.f32 %v129
    %v132 = vcvt.s32.f32 %v130
    %133 = vmin.xlane.f32.xlu0 %v132
    %v134 = vpop.xlane.xlu0 %133
    %vm135 = vcmp.eq.f32.partialorder %v132, %v134
    %v136 = vsel %vm135, %v131, inf
    %137 = vmin.xlane.f32.xlu0 %v136
    %v138 = vpop.xlane.xlu0 %137
    %v139 = vcvt.f32.s32 %v138
    %v140 = vcvt.f32.s32 %v134
    %v141 = vshll.u32 %v140, 16
    %v142 = vadd.s32 %v141, %v139
    %v143 = vsel %vm41, %v93, 2147483647
    %v144 = vand.u32 %v143, 65535
    %v145 = vshra.s32 %v143, 16
    %v146 = vcvt.s32.f32 %v144
    %v147 = vcvt.s32.f32 %v145
    %148 = vmin.xlane.f32.xlu0 %v147
    %v149 = vpop.xlane.xlu0 %148
    %vm150 = vcmp.eq.f32.partialorder %v147, %v149
    %v151 = vsel %vm150, %v146, inf
    %152 = vmin.xlane.f32.xlu0 %v151
    %v153 = vpop.xlane.xlu0 %152
    %v154 = vcvt.f32.s32 %v153
    %v155 = vcvt.f32.s32 %v149
    %v156 = vshll.u32 %v155, 16
    %v157 = vadd.s32 %v156, %v154
    %v158 = vsel %vm41, %v94, 2147483647
    %v159 = vand.u32 %v158, 65535
    %v160 = vshra.s32 %v158, 16
    %v161 = vcvt.s32.f32 %v159
    %v162 = vcvt.s32.f32 %v160
    %163 = vmin.xlane.f32.xlu0 %v162
    %v164 = vpop.xlane.xlu0 %163
    %vm165 = vcmp.eq.f32.partialorder %v162, %v164
    %v166 = vsel %vm165, %v161, inf
    %167 = vmin.xlane.f32.xlu0 %v166
    %v168 = vpop.xlane.xlu0 %167
    %v169 = vcvt.f32.s32 %v168
    %v170 = vcvt.f32.s32 %v164
    %v171 = vshll.u32 %v170, 16
    %v172 = vadd.s32 %v171, %v169
    %v173 = vsel %vm41, %v95, 2147483647
    %v174 = vand.u32 %v173, 65535
    %v175 = vshra.s32 %v173, 16
    %v176 = vcvt.s32.f32 %v174
    %v177 = vcvt.s32.f32 %v175
    %178 = vmin.xlane.f32.xlu0 %v177
    %v179 = vpop.xlane.xlu0 %178
    %vm180 = vcmp.eq.f32.partialorder %v177, %v179
    %v181 = vsel %vm180, %v176, inf
    %182 = vmin.xlane.f32.xlu0 %v181
    %v183 = vpop.xlane.xlu0 %182
    %v184 = vcvt.f32.s32 %v183
    %v185 = vcvt.f32.s32 %v179
    %v186 = vshll.u32 %v185, 16
    %v187 = vadd.s32 %v186, %v184
    %v188 = vsel %vm41, %v96, 2147483647
    %v189 = vand.u32 %v188, 65535
    %v190 = vshra.s32 %v188, 16
    %v191 = vcvt.s32.f32 %v189
    %v192 = vcvt.s32.f32 %v190
    %193 = vmin.xlane.f32.xlu0 %v192
    %v194 = vpop.xlane.xlu0 %193
    %vm195 = vcmp.eq.f32.partialorder %v192, %v194
    %v196 = vsel %vm195, %v191, inf
    %197 = vmin.xlane.f32.xlu0 %v196
    %v198 = vpop.xlane.xlu0 %197
    %v199 = vcvt.f32.s32 %v198
    %v200 = vcvt.f32.s32 %v194
    %v201 = vshll.u32 %v200, 16
    %v202 = vadd.s32 %v201, %v199
    %v203 = vsel %vm41, %v97, 2147483647
    %v204 = vand.u32 %v203, 65535
    %v205 = vshra.s32 %v203, 16
    %v206 = vcvt.s32.f32 %v204
    %v207 = vcvt.s32.f32 %v205
    %208 = vmin.xlane.f32.xlu0 %v207
    %v209 = vpop.xlane.xlu0 %208
    %vm210 = vcmp.eq.f32.partialorder %v207, %v209
    %v211 = vsel %vm210, %v206, inf
    %212 = vmin.xlane.f32.xlu0 %v211
    %v213 = vpop.xlane.xlu0 %212
    %v214 = vcvt.f32.s32 %v213
    %v215 = vcvt.f32.s32 %v209
    %v216 = vshll.u32 %v215, 16
    %v217 = vadd.s32 %v216, %v214
    %vm218 = vcmp.eq.s32.totalorder %v40, %v112
    %vm219 = vcmp.eq.s32.totalorder %v40, %v127
    %vm220 = vcmp.eq.s32.totalorder %v40, %v142
    %vm221 = vcmp.eq.s32.totalorder %v40, %v157
    %vm222 = vcmp.eq.s32.totalorder %v40, %v172
    %vm223 = vcmp.eq.s32.totalorder %v40, %v187
    %vm224 = vcmp.eq.s32.totalorder %v40, %v202
    %vm225 = vcmp.eq.s32.totalorder %v40, %v217
    %v226 = vsel %vm218, 1, 0
    %v227 = vsel %vm219, 1, 0
    %v228 = vsel %vm220, 1, 0
    %v229 = vsel %vm221, 1, 0
    %v230 = vsel %vm222, 1, 0
    %v231 = vsel %vm223, 1, 0
    %v232 = vsel %vm224, 1, 0
    %v233 = vsel %vm225, 1, 0
    %v234 = vcvt.s32.f32 %v226
    %v235 = vcvt.s32.f32 %v227
    %v236 = vcvt.s32.f32 %v228
    %v237 = vcvt.s32.f32 %v229
    %v238 = vcvt.s32.f32 %v230
    %v239 = vcvt.s32.f32 %v231
    %v240 = vcvt.s32.f32 %v232
    %v241 = vcvt.s32.f32 %v233
    %242 = vst.msk [vmem:[#allocation5] sm:$0x3] %vm41, %v234
    %243 = vst.msk [vmem:[#allocation5 + $0x2] sm:$0x3] %vm41, %v235
    %244 = vst.msk [vmem:[#allocation5 + $0x4] sm:$0x3] %vm41, %v236
    %245 = vst.msk [vmem:[#allocation5 + $0x6] sm:$0x3] %vm41, %v237
    %246 = vst.msk [vmem:[#allocation5 + $0x8] sm:$0x3] %vm41, %v238
    %247 = vst.msk [vmem:[#allocation5 + $0xa] sm:$0x3] %vm41, %v239
    %248 = vst.msk [vmem:[#allocation5 + $0xc] sm:$0x3] %vm41, %v240
    %249 = vst.msk [vmem:[#allocation5 + $0xe] sm:$0x3] %vm41, %v241
    %v250 = vperm.slane %v112, %v40
    %v251 = vperm.slane %v127, %v40
    %v252 = vperm.slane %v142, %v40
    %v253 = vperm.slane %v157, %v40
    %v254 = vperm.slane %v172, %v40
    %v255 = vperm.slane %v187, %v40
    %v256 = vperm.slane %v202, %v40
    %v257 = vperm.slane %v217, %v40
    %vm258 = vcmask 1041409
    %v259 = vsel %vm258, %v251, %v250
    %vm260 = vcmask 1042434
    %v261 = vsel %vm260, %v252, %v259
    %vm262 = vcmask 1043459
    %v263 = vsel %vm262, %v253, %v261
    %vm264 = vcmask 1044484
    %v265 = vsel %vm264, %v254, %v263
    %vm266 = vcmask 1045509
    %v267 = vsel %vm266, %v255, %v265
    %vm268 = vcmask 1046534
    %v269 = vsel %vm268, %v256, %v267
    %vm270 = vcmask 1047559
    %v271 = vsel %vm270, %v257, %v269
    %vm272 = vcmask 15360
    %273 = vst.msk [vmem:[%s4] sm:$0xff] %vm272, %v271
    %v274 = vld [vmem:[#allocation2] sm:$0xff]
    %v275 = vld [vmem:[#allocation2 + $0x8] sm:$0xff]
    %v284 = vrot.slane %v235, 7
    %v285 = vsel %vm258, %v284, %v234
    %v286 = vrot.slane %v236, 6
    %v287 = vsel %vm260, %v286, %v285
    %v288 = vrot.slane %v237, 5
    %v289 = vsel %vm262, %v288, %v287
    %v290 = vrot.slane %v238, 4
    %v291 = vsel %vm264, %v290, %v289
    %v292 = vrot.slane %v239, 3
    %v293 = vsel %vm266, %v292, %v291
    %v294 = vrot.slane %v240, 2
    %v295 = vsel %vm268, %v294, %v293
    %v296 = vrot.slane %v241, 1
    %v297 = vsel %vm270, %v296, %v295
    %vm298 = vcmask 130048
    %v299 = vsel %vm298, %v297, 0
    %301 = vmatpush.msra.mxu0 0.0
    %302 = vmatpush.msra.mxu0 0.0
    %303 = vmatpush.msra.mxu0 0.0
    %304 = vmatpush.msra.mxu0 0.0
    %305 = vmatpush.msra.mxu0 0.0
    %306 = vmatpush.msra.mxu0 0.0
    %307 = vmatpush.msra.mxu0 0.0
    %308 = vmatpush.msra.mxu0 0.0
    %309 = vmatpush.msra.mxu0 0.0
    %310 = vmatpush.msra.mxu0 0.0
    %311 = vmatpush.msra.mxu0 0.0
    %312 = vmatpush.msra.mxu0 0.0
    %313 = vmatpush.msra.mxu0 0.0
    %314 = vmatpush.msra.mxu0 0.0
    %315 = vmatpush.msra.mxu0 %v275
    %316 = vmatpush.msra.mxu0 %v274
    %317 = vmatmul.f32.gmra.mxu0 %v299
    %v318 = vpop.f32.mrf.mxu0
    %v319 = vadd.f32 0.0, %v318
    %320 = vdwg.mxu0
    %s321 = scalar_lea.vmem [#allocation2], 16
    %v322 = vld [vmem:[%s321] sm:$0xff]
    %v323 = vld [vmem:[%s321 + $0x8] sm:$0xff]
    %v324 = vrot.slane %v234, 1
    %v325 = vsel %vm258, %v235, %v324
    %v326 = vrot.slane %v236, 7
    %v327 = vsel %vm260, %v326, %v325
    %v328 = vrot.slane %v237, 6
    %v329 = vsel %vm262, %v328, %v327
    %v330 = vrot.slane %v238, 5
    %v331 = vsel %vm264, %v330, %v329
    %v332 = vrot.slane %v239, 4
    %v333 = vsel %vm266, %v332, %v331
    %v334 = vrot.slane %v240, 3
    %v335 = vsel %vm268, %v334, %v333
    %v336 = vrot.slane %v241, 2
    %v337 = vsel %vm270, %v336, %v335
    %v338 = vsel %vm298, %v337, 0
    %340 = vmatpush.msra.mxu0 0.0
    %341 = vmatpush.msra.mxu0 0.0
    %342 = vmatpush.msra.mxu0 0.0
    %343 = vmatpush.msra.mxu0 0.0
    %344 = vmatpush.msra.mxu0 0.0
    %345 = vmatpush.msra.mxu0 0.0
    %346 = vmatpush.msra.mxu0 0.0
    %347 = vmatpush.msra.mxu0 0.0
    %348 = vmatpush.msra.mxu0 0.0
    %349 = vmatpush.msra.mxu0 0.0
    %350 = vmatpush.msra.mxu0 0.0
    %351 = vmatpush.msra.mxu0 0.0
    %352 = vmatpush.msra.mxu0 0.0
    %353 = vmatpush.msra.mxu0 0.0
    %354 = vmatpush.msra.mxu0 %v323
    %355 = vmatpush.msra.mxu0 %v322
    %356 = vmatmul.f32.gmra.mxu0 %v338
    %v357 = vpop.f32.mrf.mxu0
    %v358 = vadd.f32 0.0, %v357
    %359 = vdwg.mxu0
    %361 = vrot.lane.b32.xlu0 %v358, 32
    %v362 = vpop.permute.xlu0 %361
    %vm364 = vcmask 261120
    %v365 = vsel %vm364, %v319, %v362
    %vm366 = vcmask 523264
    %367 = vst.msk [vmem:[%s3] sm:$0xff] %vm366, %v365
    // Predicated region
    $region14: #{concrete_quantizer_forward.1} parent=1 // pred_check
      _
    $region15: #{concrete_quantizer_forward.1} parent=1 // pred_check_branch
      %369 = sbr.rel (0) target = $region17
    $region16: #{concrete_quantizer_forward.1} parent=1 // pred_region
      %371 = vsyncadd [#allocation4], 0
      %s372 = sshll.u32 [#allocation5], 4
      %s373 = int_to_ptr.vmem [resolvable:$true] %s372
      %s374 = sshll.u32 %s2, 4
      %s375 = int_to_ptr.hbm [resolvable:$true] %s374
      %380 = dma.vmem_to_hbm [thread:$0]  %s373, 256, %s375, [#allocation4], 32, 32, 2
    $region17: #{concrete_quantizer_forward.1} parent=1 // pred_fallthru
      _
    // Predicated region
    $region18: #{concrete_quantizer_forward.1} parent=1 // pred_check
      _
    $region19: #{concrete_quantizer_forward.1} parent=1 // pred_check_branch
      %382 = sbr.rel (0) target = $region21
    $region20: #{concrete_quantizer_forward.1} parent=1 // pred_region
      _
    $region21: #{concrete_quantizer_forward.1} parent=1 // pred_fallthru
      _
    // Predicated region
    $region22: #{concrete_quantizer_forward.1} parent=1 // pred_check
      _
    $region23: #{concrete_quantizer_forward.1} parent=1 // pred_check_branch
      %384 = sbr.rel (0) target = $region25
    $region24: #{concrete_quantizer_forward.1} parent=1 // pred_region
      _
    $region25: #{concrete_quantizer_forward.1} parent=1 // pred_fallthru
      _
    // Predicated region
    $region26: #{concrete_quantizer_forward.1} parent=1 // pred_check
      _
    $region27: #{concrete_quantizer_forward.1} parent=1 // pred_check_branch
      %386 = sbr.rel (0) target = $region29
    $region28: #{concrete_quantizer_forward.1} parent=1 // pred_region
      %388 = dma.done [#allocation4], 256
    $region29: #{concrete_quantizer_forward.1} parent=1 // pred_fallthru
      _
    // Predicated region
    $region30: #{concrete_quantizer_forward.1} parent=1 // pred_check
      _
    $region31: #{concrete_quantizer_forward.1} parent=1 // pred_check_branch
      %390 = sbr.rel (0) target = $region33
    $region32: #{concrete_quantizer_forward.1} parent=1 // pred_region
      _
    $region33: #{concrete_quantizer_forward.1} parent=1 // pred_fallthru
      _
    // Predicated region
    $region34: #{concrete_quantizer_forward.1} parent=1 // pred_check
      _
    $region35: #{concrete_quantizer_forward.1} parent=1 // pred_check_branch
      %392 = sbr.rel (0) target = $region37
    $region36: #{concrete_quantizer_forward.1} parent=1 // pred_region
      _
    $region37: #{concrete_quantizer_forward.1} parent=1 // pred_fallthru
      _
    %393 = vsyncpa [#allocation3], 1
    %394 = vsyncpa [#allocation4], 1

</llo_original>
